<compile_context>
chip_gen: v6e
topology: v6e:2x2x1
jax: 0.10.0
libtpu: 0.0.40
codegen_flags: <defaults>
</compile_context>

<pallas_src>
import functools

import jax
import jax.numpy as jnp
from jax.experimental import pallas as pl
from jax.experimental.pallas import tpu as pltpu


def _round_up(x, m):
    return ((x + m - 1) // m) * m


def _largest_divisor_leq(n, cap):
    cap = max(1, min(n, cap))
    for t in range(cap, 0, -1):
        if n % t == 0:
            return t
    return 1


def _pick_tile(n, cap):
    """Tile for a point axis: the whole (8-padded) axis if it fits under `cap`,
    otherwise the largest lane-dense size <= cap (multiples of 256 preferred
    for v6e/v7x MXU output width, then 128, then 8)."""
    full = _round_up(n, 8)
    cap = max(8, cap)
    if full <= cap:
        return full
    if cap >= 256:
        return (cap // 256) * 256
    if cap >= 128:
        return (cap // 128) * 128
    return (cap // 8) * 8


def _vmem_capacity_bytes():
    try:
        info = pltpu.get_tpu_info()
        cap = int(getattr(info, "vmem_capacity_bytes", 0))
        if cap > 0:
            return cap
    except Exception:
        pass
    return 64 * 1024 * 1024  # conservative fallback (smallest physical VMEM)


def _chamfer_kernel(x_ref, y_ref, loss1_ref, loss2_ref, min2_ref, min1_ref, *,
                    nx, ny, tnx, tny, lane_acc):
    # x_ref:   (Bt, Tnx, Dp)  augmented gts rows   [-2*x, ||x||^2, 1, 0...]
    # y_ref:   (Bt, Tny, Dp)  augmented preds rows [ y,   1, ||y||^2, 0...]
    # loss*_ref: (Bt, 1, 1)   resident output blocks (per batch block)
    # min2_ref:  (Bt, Tnx, lane_acc)   lane-dense running min over Ny (loss_2)
    # min1_ref:  (Nj, Bt, 1, Tny)      per-Ny-tile running min over Nx (loss_1)
    i = pl.program_id(1)
    j = pl.program_id(2)
    ni = pl.num_programs(1)
    nj = pl.num_programs(2)

    # P[b, r, c] = ||x_r||^2 + ||y_c||^2 - 2<x_r, y_c>, straight off the MXU:
    # rx, ry and the -2 factor live in the padded contraction dimension.
    p = jax.lax.dot_general(
        x_ref[...], y_ref[...], (((2,), (2,)), ((0,), (0,))),
        preferred_element_type=jnp.float32)              # (Bt, Tnx, Tny)

    @pl.when((i == 0) & (j == 0))
    def _init_batch_block():
        loss1_ref[...] = jnp.zeros_like(loss1_ref)
        loss2_ref[...] = jnp.zeros_like(loss2_ref)

    # ----- loss_2 path: lane-dense running min over Ny (pure VPU in the loop) -
    part = p[:, :, 0:lane_acc]
    for c in range(1, tny // lane_acc):
        part = jnp.minimum(part, p[:, :, c * lane_acc:(c + 1) * lane_acc])

    @pl.when(j == 0)
    def _m2_init():
        min2_ref[...] = part

    @pl.when(j > 0)
    def _m2_update():
        min2_ref[...] = jnp.minimum(min2_ref[...], part)

    # ----- loss_1 path: column min over this Nx tile, running min across i ----
    col_min = jnp.min(p, axis=1, keepdims=True)          # (Bt, 1, Tny)

    @pl.when(i == 0)
    def _m1_init():
        min1_ref[j] = col_min

    @pl.when(i > 0)
    def _m1_update():
        min1_ref[j] = jnp.minimum(min1_ref[j], col_min)

    @pl.when(j == nj - 1)
    def _finish_nx_tile():
        # Single deferred cross-lane min per Nx tile, masked sum of real rows.
        row_min = jnp.min(min2_ref[...], axis=2, keepdims=True)   # (Bt, Tnx, 1)
        rid = i * tnx + jax.lax.broadcasted_iota(jnp.int32, row_min.shape, 1)
        row_min = jnp.where(rid < nx, row_min, 0.0)
        loss2_ref[...] += jnp.sum(row_min, axis=1, keepdims=True)

    @pl.when((i == ni - 1) & (j == nj - 1))
    def _finalize():
        loss2_ref[...] = loss2_ref[...] * jnp.float32(1.0 / nx)
        col = min1_ref[...]                               # (Nj, Bt, 1, Tny)
        jid = jax.lax.broadcasted_iota(jnp.int32, col.shape, 0)
        lid = jax.lax.broadcasted_iota(jnp.int32, col.shape, 3)
        col = jnp.where(jid * tny + lid < ny, col, 0.0)
        loss1_ref[...] = (jnp.sum(jnp.sum(col, axis=0), axis=2, keepdims=True)
                          * jnp.float32(1.0 / ny))


def chamfer_loss(preds, gts, *, max_ny_tile=512, max_nx_tile=1024,
                 max_batch_block=8):
    """Pallas TPU equivalent of ChamferLoss.forward(preds, gts).

    Returns (loss_1, loss_2), each of shape (B,) float32.
    """
    b, ny, d = preds.shape
    bg, nx, dg = gts.shape
    assert b == bg and d == dg, "batch / coord dims must match"
    assert d >= 1 and b >= 1

    f32 = jnp.float32
    x = gts.astype(f32)       # "x" in batch_pairwise_dist
    y = preds.astype(f32)     # "y"

    # --- Fold rx, ry and the -2 factor into the contraction dimension --------
    d_aug = d + 2
    d_pad = _round_up(d_aug, 8)
    rx = jnp.sum(x * x, axis=-1, keepdims=True)
    ry = jnp.sum(y * y, axis=-1, keepdims=True)
    x_aug = jnp.concatenate([-2.0 * x, rx, jnp.ones_like(rx)], axis=-1)
    y_aug = jnp.concatenate([y, jnp.ones_like(ry), ry], axis=-1)
    if d_pad > d_aug:
        x_aug = jnp.pad(x_aug, ((0, 0), (0, 0), (0, d_pad - d_aug)))
        y_aug = jnp.pad(y_aug, ((0, 0), (0, 0), (0, d_pad - d_aug)))

    # --- Tile sizes, chip-aware VMEM budget -----------------------------------
    vmem_cap = _vmem_capacity_bytes()
    budget = int(vmem_cap * 0.45)

    tnx = _pick_tile(nx, max_nx_tile)
    tny = _pick_tile(ny, max_ny_tile)

    def derived(tnx_, tny_):
        lane_ = 128 if tny_ % 128 == 0 else tny_
        return lane_, _round_up(nx, tnx_), _round_up(ny, tny_)

    def est_vmem(bt_, tnx_, tny_, lane_, ny_pad_):
        nj_ = ny_pad_ // tny_
        lane_p = _round_up(lane_, 128)
        tny_l = _round_up(tny_, 128)
        in_x = 2 * bt_ * tnx_ * d_pad * 4                 # double-buffered
        in_y = 2 * bt_ * tny_ * d_pad * 4
        p_tile = 2 * bt_ * tnx_ * tny_l * 4               # MXU result + temps
        m2 = bt_ * tnx_ * lane_p * 4
        m1 = nj_ * bt_ * 8 * tny_l * 4
        return in_x + in_y + p_tile + m2 + m1 + (2 << 20)

    lane_acc, nx_pad, ny_pad = derived(tnx, tny)
    while est_vmem(1, tnx, tny, lane_acc, ny_pad) > budget:
        if tnx > 8 and (tnx >= tny or tny <= 128):
            tnx = max(8, _round_up(tnx // 2, 8))
        elif tny > 128:
            tny = max(128, _round_up(tny // 2, 128))
        elif tny > 8:
            tny = max(8, _round_up(tny // 2, 8))
        else:
            break
        lane_acc, nx_pad, ny_pad = derived(tnx, tny)

    # Batch block: amortize grid overhead, but keep >= 2 batch grid steps so the
    # parallel axis can be sharded across v7x's two TensorCores.
    bt_cap = max(1, min(max_batch_block, b // 2 if b >= 2 else 1))
    bt = _largest_divisor_leq(b, bt_cap)
    while bt > 1 and est_vmem(bt, tnx, tny, lane_acc, ny_pad) > budget:
        bt = _largest_divisor_leq(b, bt - 1)

    # --- Sentinel padding of the point axes (masked out inside the kernel) ----
    BIG = jnp.float32(1e30)
    if nx_pad > nx:
        pad_row = jnp.zeros((d_pad,), f32).at[d].set(BIG)       # rx slot = BIG
        x_aug = jnp.concatenate(
            [x_aug, jnp.broadcast_to(pad_row, (b, nx_pad - nx, d_pad))], axis=1)
    if ny_pad > ny:
        pad_row = jnp.zeros((d_pad,), f32).at[d + 1].set(BIG)   # ry slot = BIG
        y_aug = jnp.concatenate(
            [y_aug, jnp.broadcast_to(pad_row, (b, ny_pad - ny, d_pad))], axis=1)

    grid = (b // bt, nx_pad // tnx, ny_pad // tny)
    nj = ny_pad // tny

    kernel = functools.partial(_chamfer_kernel, nx=nx, ny=ny, tnx=tnx, tny=tny,
                               lane_acc=lane_acc)

    out_shape = (jax.ShapeDtypeStruct((b, 1, 1), f32),
                 jax.ShapeDtypeStruct((b, 1, 1), f32))

    vmem_limit = int(min(int(vmem_cap * 0.9),
                         max(est_vmem(bt, tnx, tny, lane_acc, ny_pad),
                             32 * 1024 * 1024)))

    cost = pl.CostEstimate(
        flops=2 * b * nx_pad * ny_pad * d_pad + 4 * b * nx_pad * ny_pad,
        transcendentals=0,
        bytes_accessed=(b * (nx_pad + ny_pad) * d_pad + 2 * b) * 4,
    )

    loss1, loss2 = pl.pallas_call(
        kernel,
        out_shape=out_shape,
        grid_spec=pltpu.PrefetchScalarGridSpec(
            num_scalar_prefetch=0,
            grid=grid,
            in_specs=[
                pl.BlockSpec((bt, tnx, d_pad), lambda bi, i, j: (bi, i, 0)),  # x
                pl.BlockSpec((bt, tny, d_pad), lambda bi, i, j: (bi, j, 0)),  # y
            ],
            out_specs=(
                pl.BlockSpec((bt, 1, 1), lambda bi, i, j: (bi, 0, 0)),
                pl.BlockSpec((bt, 1, 1), lambda bi, i, j: (bi, 0, 0)),
            ),
            scratch_shapes=[
                pltpu.VMEM((bt, tnx, lane_acc), f32),     # loss_2 running min
                pltpu.VMEM((nj, bt, 1, tny), f32),        # loss_1 running min
            ],
        ),
        compiler_params=pltpu.CompilerParams(
            dimension_semantics=("parallel", "arbitrary", "arbitrary"),
            vmem_limit_bytes=vmem_limit),
        cost_estimate=cost,
    )(x_aug, y_aug)

    return loss1.reshape(b), loss2.reshape(b)


def chamfer_ref(preds, gts):
    """Pure-JAX reference mirroring the PyTorch module exactly."""
    x, y = gts, preds
    zz = jnp.einsum('bnd,bmd->bnm', x, y)
    rx = jnp.sum(x * x, axis=-1)                                   # (B, Nx)
    ry = jnp.sum(y * y, axis=-1)                                   # (B, Ny)
    P = rx[:, :, None] + ry[:, None, :] - 2.0 * zz                 # (B, Nx, Ny)
    loss1 = jnp.mean(jnp.min(P, axis=1), axis=1)
    loss2 = jnp.mean(jnp.min(P, axis=2), axis=1)
    return loss1, loss2


if __name__ == "__main__":
    key = jax.random.PRNGKey(0)
    k1, k2, k3, k4 = jax.random.split(key, 4)

    B, N_PRED, N_GT, D = 2, 256, 160, 3
    preds = jax.random.normal(k1, (B, N_PRED, D), dtype=jnp.float32)
    gts = jax.random.normal(k2, (B, N_GT, D), dtype=jnp.float32)

    loss1, loss2 = chamfer_loss(preds, gts)
    jax.block_until_ready((loss1, loss2))

    ref1, ref2 = chamfer_ref(preds, gts)
    assert loss1.shape == (B,) and loss2.shape == (B,)
    assert jnp.allclose(loss1, ref1, rtol=1e-4, atol=1e-4), (loss1, ref1)
    assert jnp.allclose(loss2, ref2, rtol=1e-4, atol=1e-4), (loss2, ref2)

    # Exercise the Nx/Ny-tiled accumulation path (running mins + Nx padding).
    t1, t2 = chamfer_loss(preds, gts, max_ny_tile=64, max_nx_tile=64)
    jax.block_until_ready((t1, t2))
    assert jnp.allclose(t1, ref1, rtol=1e-4, atol=1e-4), (t1, ref1)
    assert jnp.allclose(t2, ref2, rtol=1e-4, atol=1e-4), (t2, ref2)

    # Ragged sizes (not multiples of 8) exercise sentinel padding + masks.
    preds_r = jax.random.normal(k3, (B, 250, D), dtype=jnp.float32)
    gts_r = jax.random.normal(k4, (B, 150, D), dtype=jnp.float32)
    r1, r2 = chamfer_loss(preds_r, gts_r)
    jax.block_until_ready((r1, r2))
    rr1, rr2 = chamfer_ref(preds_r, gts_r)
    assert jnp.allclose(r1, rr1, rtol=1e-4, atol=1e-4), (r1, rr1)
    assert jnp.allclose(r2, rr2, rtol=1e-4, atol=1e-4), (r2, rr2)

    print("KERNEL_OK")
</pallas_src>

<mosaic_0001>
module attributes {stable_mosaic.version = 11 : i64} {
  func.func @_chamfer_kernel(%arg0: i32, %arg1: i32, %arg2: i32, %arg3: memref<1x160x8xf32, #tpu.memory_space<vmem>>, %arg4: memref<1x256x8xf32, #tpu.memory_space<vmem>>, %arg5: memref<1x1x1xf32, #tpu.memory_space<vmem>>, %arg6: memref<1x1x1xf32, #tpu.memory_space<vmem>>, %arg7: memref<1x160x128xf32, #tpu.memory_space<vmem>>, %arg8: memref<1x1x1x256xf32, #tpu.memory_space<vmem>>) attributes {dimension_semantics = [#tpu.dimension_semantics<parallel>, #tpu.dimension_semantics<arbitrary>, #tpu.dimension_semantics<arbitrary>], iteration_bounds = array<i64: 2, 1, 1>, scalar_prefetch = 0 : i64, scratch_operands = 2 : i64, tpu.core_type = #tpu.core_type<tc>, window_params = [{transform_indices = @transform_0, window_bounds = array<i64: 1, 160, 8>}, {transform_indices = @transform_1, window_bounds = array<i64: 1, 256, 8>}, {transform_indices = @transform_2, window_bounds = array<i64: 1, 1, 1>}, {transform_indices = @transform_3, window_bounds = array<i64: 1, 1, 1>}]} {
    %c0 = arith.constant 0 : index
    %c0_0 = arith.constant 0 : index
    %c0_1 = arith.constant 0 : index
    %0 = vector.load %arg3[%c0, %c0_0, %c0_1] : memref<1x160x8xf32, #tpu.memory_space<vmem>>, vector<1x160x8xf32>
    %c0_2 = arith.constant 0 : index
    %c0_3 = arith.constant 0 : index
    %c0_4 = arith.constant 0 : index
    %1 = vector.load %arg4[%c0_2, %c0_3, %c0_4] : memref<1x256x8xf32, #tpu.memory_space<vmem>>, vector<1x256x8xf32>
    %cst = arith.constant dense<0.000000e+00> : vector<1x160x256xf32>
    %2 = tpu.matmul %0, %1, %cst {dimension_numbers = #tpu.dot_dimension_numbers<[2], [2], [1], [1], [0, 0, 0, 1, 1, 1], [0], [0]>} : vector<1x160x8xf32>, vector<1x256x8xf32>, vector<1x160x256xf32> -> vector<1x160x256xf32>
    %c0_i32 = arith.constant 0 : i32
    %3 = arith.cmpi eq, %arg1, %c0_i32 : i32
    %c0_i32_5 = arith.constant 0 : i32
    %4 = arith.cmpi eq, %arg2, %c0_i32_5 : i32
    %5 = arith.andi %3, %4 : i1
    %6 = arith.extui %5 : i1 to i32
    %c0_i32_6 = arith.constant 0 : i32
    %7 = arith.cmpi ne, %6, %c0_i32_6 : i32
    scf.if %7 {
      %cst_21 = arith.constant 0.000000e+00 : f32
      %33 = vector.broadcast %cst_21 : f32 to vector<1x1x1xf32>
      %c0_22 = arith.constant 0 : index
      %c0_23 = arith.constant 0 : index
      %c0_24 = arith.constant 0 : index
      %34 = vector.load %arg5[%c0_22, %c0_23, %c0_24] : memref<1x1x1xf32, #tpu.memory_space<vmem>>, vector<1x1x1xf32>
      tpu.vector_store %arg5[%c0_22, %c0_23, %c0_24], %33 {strides = array<i32>} : memref<1x1x1xf32, #tpu.memory_space<vmem>>, vector<1x1x1xf32>,
      %cst_25 = arith.constant 0.000000e+00 : f32
      %35 = vector.broadcast %cst_25 : f32 to vector<1x1x1xf32>
      %c0_26 = arith.constant 0 : index
      %c0_27 = arith.constant 0 : index
      %c0_28 = arith.constant 0 : index
      %36 = vector.load %arg6[%c0_26, %c0_27, %c0_28] : memref<1x1x1xf32, #tpu.memory_space<vmem>>, vector<1x1x1xf32>
      tpu.vector_store %arg6[%c0_26, %c0_27, %c0_28], %35 {strides = array<i32>} : memref<1x1x1xf32, #tpu.memory_space<vmem>>, vector<1x1x1xf32>,
    } else {
    }
    %8 = vector.extract_strided_slice %2 {offsets = [0, 0, 0], sizes = [1, 160, 128], strides = [1, 1, 1]} : vector<1x160x256xf32> to vector<1x160x128xf32>
    %9 = vector.extract_strided_slice %2 {offsets = [0, 0, 128], sizes = [1, 160, 128], strides = [1, 1, 1]} : vector<1x160x256xf32> to vector<1x160x128xf32>
    %10 = arith.minimumf %8, %9 : vector<1x160x128xf32>
    %c0_i32_7 = arith.constant 0 : i32
    %11 = arith.cmpi eq, %arg2, %c0_i32_7 : i32
    %12 = arith.extui %11 : i1 to i32
    %c0_i32_8 = arith.constant 0 : i32
    %13 = arith.cmpi ne, %12, %c0_i32_8 : i32
    scf.if %13 {
      %c0_21 = arith.constant 0 : index
      %c0_22 = arith.constant 0 : index
      %c0_23 = arith.constant 0 : index
      %33 = vector.load %arg7[%c0_21, %c0_22, %c0_23] : memref<1x160x128xf32, #tpu.memory_space<vmem>>, vector<1x160x128xf32>
      tpu.vector_store %arg7[%c0_21, %c0_22, %c0_23], %10 {strides = array<i32>} : memref<1x160x128xf32, #tpu.memory_space<vmem>>, vector<1x160x128xf32>,
    } else {
    }
    %c0_i32_9 = arith.constant 0 : i32
    %14 = arith.cmpi sgt, %arg2, %c0_i32_9 : i32
    %15 = arith.extui %14 : i1 to i32
    %c0_i32_10 = arith.constant 0 : i32
    %16 = arith.cmpi ne, %15, %c0_i32_10 : i32
    scf.if %16 {
      %c0_21 = arith.constant 0 : index
      %c0_22 = arith.constant 0 : index
      %c0_23 = arith.constant 0 : index
      %33 = vector.load %arg7[%c0_21, %c0_22, %c0_23] : memref<1x160x128xf32, #tpu.memory_space<vmem>>, vector<1x160x128xf32>
      %34 = arith.minimumf %33, %10 : vector<1x160x128xf32>
      %c0_24 = arith.constant 0 : index
      %c0_25 = arith.constant 0 : index
      %c0_26 = arith.constant 0 : index
      %35 = vector.load %arg7[%c0_24, %c0_25, %c0_26] : memref<1x160x128xf32, #tpu.memory_space<vmem>>, vector<1x160x128xf32>
      tpu.vector_store %arg7[%c0_24, %c0_25, %c0_26], %34 {strides = array<i32>} : memref<1x160x128xf32, #tpu.memory_space<vmem>>, vector<1x160x128xf32>,
    } else {
    }
    %cst_11 = arith.constant dense<0x7F800000> : vector<1x256xf32>
    %17 = vector.multi_reduction <minimumf>, %2, %cst_11 [1] : vector<1x160x256xf32> to vector<1x256xf32>
    %18 = vector.shape_cast %17 : vector<1x256xf32> to vector<1x1x256xf32>
    %c0_i32_12 = arith.constant 0 : i32
    %19 = arith.cmpi eq, %arg1, %c0_i32_12 : i32
    %20 = arith.extui %19 : i1 to i32
    %c0_i32_13 = arith.constant 0 : i32
    %21 = arith.cmpi ne, %20, %c0_i32_13 : i32
    scf.if %21 {
      %33 = arith.index_cast %arg2 : i32 to index
      %c0_21 = arith.constant 0 : index
      %c0_22 = arith.constant 0 : index
      %c0_23 = arith.constant 0 : index
      %34 = vector.load %arg8[%33, %c0_21, %c0_22, %c0_23] : memref<1x1x1x256xf32, #tpu.memory_space<vmem>>, vector<1x1x1x256xf32>
      %35 = vector.shape_cast %34 : vector<1x1x1x256xf32> to vector<1x1x256xf32>
      %36 = vector.shape_cast %18 : vector<1x1x256xf32> to vector<1x1x1x256xf32>
      tpu.vector_store %arg8[%33, %c0_21, %c0_22, %c0_23], %36 {strides = array<i32>} : memref<1x1x1x256xf32, #tpu.memory_space<vmem>>, vector<1x1x1x256xf32>,
    } else {
    }
    %c0_i32_14 = arith.constant 0 : i32
    %22 = arith.cmpi sgt, %arg1, %c0_i32_14 : i32
    %23 = arith.extui %22 : i1 to i32
    %c0_i32_15 = arith.constant 0 : i32
    %24 = arith.cmpi ne, %23, %c0_i32_15 : i32
    scf.if %24 {
      %33 = arith.index_cast %arg2 : i32 to index
      %c0_21 = arith.constant 0 : index
      %c0_22 = arith.constant 0 : index
      %c0_23 = arith.constant 0 : index
      %34 = vector.load %arg8[%33, %c0_21, %c0_22, %c0_23] : memref<1x1x1x256xf32, #tpu.memory_space<vmem>>, vector<1x1x1x256xf32>
      %35 = vector.shape_cast %34 : vector<1x1x1x256xf32> to vector<1x1x256xf32>
      %36 = arith.minimumf %35, %18 : vector<1x1x256xf32>
      %37 = arith.index_cast %arg2 : i32 to index
      %c0_24 = arith.constant 0 : index
      %c0_25 = arith.constant 0 : index
      %c0_26 = arith.constant 0 : index
      %38 = vector.load %arg8[%37, %c0_24, %c0_25, %c0_26] : memref<1x1x1x256xf32, #tpu.memory_space<vmem>>, vector<1x1x1x256xf32>
      %39 = vector.shape_cast %38 : vector<1x1x1x256xf32> to vector<1x1x256xf32>
      %40 = vector.shape_cast %36 : vector<1x1x256xf32> to vector<1x1x1x256xf32>
      tpu.vector_store %arg8[%37, %c0_24, %c0_25, %c0_26], %40 {strides = array<i32>} : memref<1x1x1x256xf32, #tpu.memory_space<vmem>>, vector<1x1x1x256xf32>,
    } else {
    }
    %c0_i32_16 = arith.constant 0 : i32
    %25 = arith.cmpi eq, %arg2, %c0_i32_16 : i32
    %26 = arith.extui %25 : i1 to i32
    %c0_i32_17 = arith.constant 0 : i32
    %27 = arith.cmpi ne, %26, %c0_i32_17 : i32
    scf.if %27 {
      %c0_21 = arith.constant 0 : index
      %c0_22 = arith.constant 0 : index
      %c0_23 = arith.constant 0 : index
      %33 = vector.load %arg7[%c0_21, %c0_22, %c0_23] : memref<1x160x128xf32, #tpu.memory_space<vmem>>, vector<1x160x128xf32>
      %cst_24 = arith.constant dense<0x7F800000> : vector<1x160xf32>
      %34 = vector.multi_reduction <minimumf>, %33, %cst_24 [2] : vector<1x160x128xf32> to vector<1x160xf32>
      %35 = vector.shape_cast %34 : vector<1x160xf32> to vector<1x160x1xf32>
      %c160_i32 = arith.constant 160 : i32
      %36 = arith.muli %arg1, %c160_i32 : i32
      %37 = tpu.iota {dimensions = array<i32: 1>} : vector<1x160x1xi32>
      %38 = vector.broadcast %36 : i32 to vector<1x160x1xi32>
      %39 = arith.addi %38, %37 : vector<1x160x1xi32>
      %c160_i32_25 = arith.constant 160 : i32
      %40 = vector.broadcast %c160_i32_25 : i32 to vector<1x160x1xi32>
      %41 = arith.cmpi slt, %39, %40 : vector<1x160x1xi32>
      %cst_26 = arith.constant 0.000000e+00 : f32
      %42 = vector.broadcast %cst_26 : f32 to vector<1x160x1xf32>
      %43 = arith.select %41, %35, %42 : vector<1x160x1xi1>, vector<1x160x1xf32>
      %c0_27 = arith.constant 0 : index
      %c0_28 = arith.constant 0 : index
      %c0_29 = arith.constant 0 : index
      %44 = vector.load %arg6[%c0_27, %c0_28, %c0_29] : memref<1x1x1xf32, #tpu.memory_space<vmem>>, vector<1x1x1xf32>
      %cst_30 = arith.constant dense<0.000000e+00> : vector<1x1xf32>
      %45 = vector.multi_reduction <add>, %43, %cst_30 [1] : vector<1x160x1xf32> to vector<1x1xf32>
      %46 = vector.shape_cast %45 : vector<1x1xf32> to vector<1x1x1xf32>
      %47 = arith.addf %44, %46 : vector<1x1x1xf32>
      %c0_31 = arith.constant 0 : index
      %c0_32 = arith.constant 0 : index
      %c0_33 = arith.constant 0 : index
      %48 = vector.load %arg6[%c0_31, %c0_32, %c0_33] : memref<1x1x1xf32, #tpu.memory_space<vmem>>, vector<1x1x1xf32>
      tpu.vector_store %arg6[%c0_31, %c0_32, %c0_33], %47 {strides = array<i32>} : memref<1x1x1xf32, #tpu.memory_space<vmem>>, vector<1x1x1xf32>,
    } else {
    }
    %c0_i32_18 = arith.constant 0 : i32
    %28 = arith.cmpi eq, %arg1, %c0_i32_18 : i32
    %c0_i32_19 = arith.constant 0 : i32
    %29 = arith.cmpi eq, %arg2, %c0_i32_19 : i32
    %30 = arith.andi %28, %29 : i1
    %31 = arith.extui %30 : i1 to i32
    %c0_i32_20 = arith.constant 0 : i32
    %32 = arith.cmpi ne, %31, %c0_i32_20 : i32
    scf.if %32 {
      %c0_21 = arith.constant 0 : index
      %c0_22 = arith.constant 0 : index
      %c0_23 = arith.constant 0 : index
      %33 = vector.load %arg6[%c0_21, %c0_22, %c0_23] : memref<1x1x1xf32, #tpu.memory_space<vmem>>, vector<1x1x1xf32>
      %cst_24 = arith.constant 6.250000e-03 : f32
      %34 = vector.broadcast %cst_24 : f32 to vector<1x1x1xf32>
      %35 = arith.mulf %33, %34 : vector<1x1x1xf32>
      %c0_25 = arith.constant 0 : index
      %c0_26 = arith.constant 0 : index
      %c0_27 = arith.constant 0 : index
      %36 = vector.load %arg6[%c0_25, %c0_26, %c0_27] : memref<1x1x1xf32, #tpu.memory_space<vmem>>, vector<1x1x1xf32>
      tpu.vector_store %arg6[%c0_25, %c0_26, %c0_27], %35 {strides = array<i32>} : memref<1x1x1xf32, #tpu.memory_space<vmem>>, vector<1x1x1xf32>,
      %c0_28 = arith.constant 0 : index
      %c0_29 = arith.constant 0 : index
      %c0_30 = arith.constant 0 : index
      %c0_31 = arith.constant 0 : index
      %37 = vector.load %arg8[%c0_28, %c0_29, %c0_30, %c0_31] : memref<1x1x1x256xf32, #tpu.memory_space<vmem>>, vector<1x1x1x256xf32>
      %38 = tpu.iota {dimensions = array<i32: 0>} : vector<1x1x1x256xi32>
      %39 = tpu.iota {dimensions = array<i32: 3>} : vector<1x1x1x256xi32>
      %c256_i32 = arith.constant 256 : i32
      %40 = vector.broadcast %c256_i32 : i32 to vector<1x1x1x256xi32>
      %41 = arith.muli %38, %40 : vector<1x1x1x256xi32>
      %42 = arith.addi %41, %39 : vector<1x1x1x256xi32>
      %c256_i32_32 = arith.constant 256 : i32
      %43 = vector.broadcast %c256_i32_32 : i32 to vector<1x1x1x256xi32>
      %44 = arith.cmpi slt, %42, %43 : vector<1x1x1x256xi32>
      %cst_33 = arith.constant 0.000000e+00 : f32
      %45 = vector.broadcast %cst_33 : f32 to vector<1x1x1x256xf32>
      %46 = arith.select %44, %37, %45 : vector<1x1x1x256xi1>, vector<1x1x1x256xf32>
      %cst_34 = arith.constant dense<0.000000e+00> : vector<1x1x256xf32>
      %47 = vector.multi_reduction <add>, %46, %cst_34 [0] : vector<1x1x1x256xf32> to vector<1x1x256xf32>
      %cst_35 = arith.constant dense<0.000000e+00> : vector<1x1xf32>
      %48 = vector.multi_reduction <add>, %47, %cst_35 [2] : vector<1x1x256xf32> to vector<1x1xf32>
      %49 = vector.shape_cast %48 : vector<1x1xf32> to vector<1x1x1xf32>
      %cst_36 = arith.constant 3.906250e-03 : f32
      %50 = vector.broadcast %cst_36 : f32 to vector<1x1x1xf32>
      %51 = arith.mulf %49, %50 : vector<1x1x1xf32>
      %c0_37 = arith.constant 0 : index
      %c0_38 = arith.constant 0 : index
      %c0_39 = arith.constant 0 : index
      %52 = vector.load %arg5[%c0_37, %c0_38, %c0_39] : memref<1x1x1xf32, #tpu.memory_space<vmem>>, vector<1x1x1xf32>
      tpu.vector_store %arg5[%c0_37, %c0_38, %c0_39], %51 {strides = array<i32>} : memref<1x1x1xf32, #tpu.memory_space<vmem>>, vector<1x1x1xf32>,
    } else {
    }
    return
  }
  func.func @transform_0(%arg0: i32, %arg1: i32, %arg2: i32) -> (i32, i32, i32) {
    %c0_i32 = arith.constant 0 : i32
    %c0_i32_0 = arith.constant 0 : i32
    return %arg0, %arg1, %c0_i32 : i32, i32, i32
  }
  func.func @transform_1(%arg0: i32, %arg1: i32, %arg2: i32) -> (i32, i32, i32) {
    %c0_i32 = arith.constant 0 : i32
    %c0_i32_0 = arith.constant 0 : i32
    return %arg0, %arg2, %c0_i32 : i32, i32, i32
  }
  func.func @transform_2(%arg0: i32, %arg1: i32, %arg2: i32) -> (i32, i32, i32) {
    %c0_i32 = arith.constant 0 : i32
    %c0_i32_0 = arith.constant 0 : i32
    %c0_i32_1 = arith.constant 0 : i32
    return %arg0, %c0_i32, %c0_i32_0 : i32, i32, i32
  }
  func.func @transform_3(%arg0: i32, %arg1: i32, %arg2: i32) -> (i32, i32, i32) {
    %c0_i32 = arith.constant 0 : i32
    %c0_i32_0 = arith.constant 0 : i32
    %c0_i32_1 = arith.constant 0 : i32
    return %arg0, %c0_i32, %c0_i32_0 : i32, i32, i32
  }
}

</mosaic_0001>

<llo_original>
// kernel: tpu_custom_call.1
$region0: #{tpu_custom_call.1}
  #allocation0 [shape = 'u32[]', space=smem, size = 0x4, offset = 0x4, fixed_abs, tag = 'smem constant byte address 0x4 - core index']
  #allocation1 [shape = 'u32[144,128]{1,0:T(1,128)}', space=vmem, size = 0x12000, scoped, tag = 'internal scratch']
  #allocation2 [shape = 'f32[1,160,128]{2,1,0:T(8,128)}', space=vmem, size = 0x14000, scoped, tag = 'scratch operand']
  #allocation3 [shape = 'f32[1,1,1,256]{3,2,1,0:T(1,128)}', space=vmem, size = 0x400, scoped, tag = 'scratch operand']
  %s0 = inlined_call_operand.vmem [shape: f32[2,160,8], index: 0, kind: input, shape index: {}]
  %s1 = inlined_call_operand.vmem [shape: f32[2,256,8], index: 1, kind: input, shape index: {}]
  %s2 = inlined_call_operand.vmem [shape: f32[2,1,1], index: 2, kind: output, shape index: {0}]
  %s3 = inlined_call_operand.vmem [shape: f32[2,1,1], index: 3, kind: output, shape index: {1}]
  %4 = xla_tuple %s2, %s3
  %s5 = sld [smem:[#allocation0]]
  $region77: #{tpu_custom_call.1} parent=0
    _
  %s7 = ssub.s32 1, %s5
  %s8 = scalar_select 0, %s7, %s5
  loop: start=0, step=1, limit=4
  $region2: #{tpu_custom_call.1} parent=0 // loop_pre_header
    _
  $region3: #{tpu_custom_call.1} parent=0 // loop_header
    %s10 = sphi 0, %s14
    %p11 = scmp.ge.s32.totalorder %s10, 4
    %s17 = sphi 0, %s36
    %s18 = sphi 0, %s32
    %s19 = sphi 0, %s28
    %s20 = sphi 0, %s17
    %s21 = sphi 0, %s18
    %s22 = sphi 0, %s19
    %s23 = sphi 0, %s20
    %s24 = sphi 0, %s21
    %s25 = sphi 0, %s22
    %s41 = sphi 0, %s43
    %s44 = sphi 0, %s41
    %s45 = sphi 0, %s44
    %s61 = sphi 0, %s45
    %s69 = sphi 0, %s71
    %s72 = sphi 0, %s69
    %s73 = sphi 0, %s72
    %s89 = sphi 0, %s73
    %s95 = sphi 0, %s97
    %s98 = sphi 0, %s95
    %s99 = sphi 0, %s98
    %s115 = sphi 0, %s99
    %s121 = sphi 0, %s123
    %s124 = sphi 0, %s121
    %s125 = sphi 0, %s124
    %s141 = sphi 0, %s125
  $region4: #{tpu_custom_call.1} parent=0 // loop_header_branch
    %13 = sbr.rel (%p11) target = $region8
  $region5: #{tpu_custom_call.1} parent=0 // loop_body
    %s15 = ssub.s32 %s10, 1
    %s16 = ssub.s32 %s10, 2
    %s26 = sadd.s32 1, %s19
    %p27 = scmp.ge.s32.totalorder %s26, 1
    %s28 = scalar_select %p27, 0, %s26
    %s29 = sadd.s32 1, %s18
    %s30 = scalar_select %p27, %s29, %s18
    %p31 = scmp.ge.s32.totalorder %s30, 1
    %s32 = scalar_select %p31, 0, %s30
    %s33 = sadd.s32 1, %s17
    %s34 = scalar_select %p31, %s33, %s17
    %p35 = scmp.ge.s32.totalorder %s34, 2
    %s36 = scalar_select %p35, 0, %s34
    %s37 = ssub.s32 %s17, %s36
    %s38 = ssub.s32 %s18, %s32
    %s39 = sor.u32 %s37, %s38
    %p40 = scmp.eq.s32.totalorder %s39, 0
    %s42 = sadd.s32 %s41, 1
    %s43 = scalar_select %p40, %s41, %s42
    %p46 = pneg %p40
    %p47 = scmp.eq.s32.totalorder %s10, 1
    %p48 = por %p46, %p47
    %p49 = scmp.ne.s32.totalorder %s41, %s44
    %p50 = scmp.eq.s32.totalorder %s10, 0
    %p51 = por %p49, %p50
    %p52 = scmp.ne.s32.totalorder %s41, %s44
    %p53 = scmp.eq.s32.totalorder %s15, 1
    %p54 = por %p52, %p53
    %p55 = scmp.ne.s32.totalorder %s44, %s45
    %p56 = scmp.eq.s32.totalorder %s15, 0
    %p57 = por %p55, %p56
    %p58 = scmp.ne.s32.totalorder %s44, %s45
    %p59 = scmp.eq.s32.totalorder %s16, 1
    %p60 = por %p58, %p59
    %p62 = scmp.ne.s32.totalorder %s45, %s61
    %p63 = scmp.eq.s32.totalorder %s16, 0
    %p64 = por %p62, %p63
    %s65 = ssub.s32 %s17, %s36
    %s66 = ssub.s32 %s19, %s28
    %s67 = sor.u32 %s65, %s66
    %p68 = scmp.eq.s32.totalorder %s67, 0
    %s70 = sadd.s32 %s69, 1
    %s71 = scalar_select %p68, %s69, %s70
    %p74 = pneg %p68
    %p75 = scmp.eq.s32.totalorder %s10, 1
    %p76 = por %p74, %p75
    %p77 = scmp.ne.s32.totalorder %s69, %s72
    %p78 = scmp.eq.s32.totalorder %s10, 0
    %p79 = por %p77, %p78
    %p80 = scmp.ne.s32.totalorder %s69, %s72
    %p81 = scmp.eq.s32.totalorder %s15, 1
    %p82 = por %p80, %p81
    %p83 = scmp.ne.s32.totalorder %s72, %s73
    %p84 = scmp.eq.s32.totalorder %s15, 0
    %p85 = por %p83, %p84
    %p86 = scmp.ne.s32.totalorder %s72, %s73
    %p87 = scmp.eq.s32.totalorder %s16, 1
    %p88 = por %p86, %p87
    %p90 = scmp.ne.s32.totalorder %s73, %s89
    %p91 = scmp.eq.s32.totalorder %s16, 0
    %p92 = por %p90, %p91
    %s93 = ssub.s32 %s17, %s36
    %p94 = scmp.eq.s32.totalorder %s93, 0
    %s96 = sadd.s32 %s95, 1
    %s97 = scalar_select %p94, %s95, %s96
    %p100 = pneg %p94
    %p101 = scmp.eq.s32.totalorder %s10, 1
    %p102 = por %p100, %p101
    %p103 = scmp.ne.s32.totalorder %s95, %s98
    %p104 = scmp.eq.s32.totalorder %s10, 0
    %p105 = por %p103, %p104
    %p106 = scmp.ne.s32.totalorder %s95, %s98
    %p107 = scmp.eq.s32.totalorder %s15, 1
    %p108 = por %p106, %p107
    %p109 = scmp.ne.s32.totalorder %s98, %s99
    %p110 = scmp.eq.s32.totalorder %s15, 0
    %p111 = por %p109, %p110
    %p112 = scmp.ne.s32.totalorder %s98, %s99
    %p113 = scmp.eq.s32.totalorder %s16, 1
    %p114 = por %p112, %p113
    %p116 = scmp.ne.s32.totalorder %s99, %s115
    %p117 = scmp.eq.s32.totalorder %s16, 0
    %p118 = por %p116, %p117
    %s119 = ssub.s32 %s17, %s36
    %p120 = scmp.eq.s32.totalorder %s119, 0
    %s122 = sadd.s32 %s121, 1
    %s123 = scalar_select %p120, %s121, %s122
    %p126 = pneg %p120
    %p127 = scmp.eq.s32.totalorder %s10, 1
    %p128 = por %p126, %p127
    %p129 = scmp.ne.s32.totalorder %s121, %s124
    %p130 = scmp.eq.s32.totalorder %s10, 0
    %p131 = por %p129, %p130
    %p132 = scmp.ne.s32.totalorder %s121, %s124
    %p133 = scmp.eq.s32.totalorder %s15, 1
    %p134 = por %p132, %p133
    %p135 = scmp.ne.s32.totalorder %s124, %s125
    %p136 = scmp.eq.s32.totalorder %s15, 0
    %p137 = por %p135, %p136
    %p138 = scmp.ne.s32.totalorder %s124, %s125
    %p139 = scmp.eq.s32.totalorder %s16, 1
    %p140 = por %p138, %p139
    %p142 = scmp.ne.s32.totalorder %s125, %s141
    %p143 = scmp.eq.s32.totalorder %s16, 0
    %p144 = por %p142, %p143
    %p145 = scmp.le.s32.totalorder 1, %s10
    %p146 = scmp.lt.s32.totalorder %s10, 3
    %p147 = pnand %p145, %p146
    %p148 = pneg %p147
    // Predicated region
    $region9: #{tpu_custom_call.1} parent=5 // pred_check
      _
    $region10: #{tpu_custom_call.1} parent=5 // pred_check_branch
      %150 = sbr.rel (%p147) target = $region12
    $region11: #{tpu_custom_call.1} parent=5 // pred_region
      %s151 = ssub.s32 %s10, 1
    $region12: #{tpu_custom_call.1} parent=5 // pred_fallthru
      _
    %p152 = scmp.lt.s32.totalorder %s10, 2
    // Predicated region
    $region13: #{tpu_custom_call.1} parent=5 // pred_check
      %p153 = pneg %p152
    $region14: #{tpu_custom_call.1} parent=5 // pred_check_branch
      %155 = sbr.rel (%p153) target = $region16
    $region15: #{tpu_custom_call.1} parent=5 // pred_region
      // Predicated region
      $region17: #{tpu_custom_call.1} parent=15 // pred_check
        %p156 = pneg %p51
      $region18: #{tpu_custom_call.1} parent=15 // pred_check_branch
        %158 = sbr.rel (%p156) target = $region20
      $region19: #{tpu_custom_call.1} parent=15 // pred_region
        %s159 = smul.u32 20, %s18
        %p160 = scmp.lt.s32.totalorder %s17, 1
        %s161 = scalar_select %p160, %s17, 1
        %p162 = scmp.lt.s32.totalorder %s159, 19
        %s163 = scalar_select %p162, %s159, 19
        %s164 = smul.addr %s161, 20
        %s165 = sadd.s32 %s163, %s164
        %s166 = smul.addr %s165, 8
        %s167 = scalar_lea.vmem %s0, %s166
        %s168 = smul.u32 20, %s18
      $region20: #{tpu_custom_call.1} parent=15 // pred_fallthru
        _
      // Predicated region
      $region21: #{tpu_custom_call.1} parent=15 // pred_check
        %p169 = pneg %p79
      $region22: #{tpu_custom_call.1} parent=15 // pred_check_branch
        %171 = sbr.rel (%p169) target = $region24
      $region23: #{tpu_custom_call.1} parent=15 // pred_region
        %s172 = smul.u32 32, %s19
        %p173 = scmp.lt.s32.totalorder %s17, 1
        %s174 = scalar_select %p173, %s17, 1
        %p175 = scmp.lt.s32.totalorder %s172, 31
        %s176 = scalar_select %p175, %s172, 31
        %s177 = smul.addr %s174, 32
        %s178 = sadd.s32 %s176, %s177
        %s179 = smul.addr %s178, 8
        %s180 = scalar_lea.vmem %s1, %s179
        %s181 = smul.u32 32, %s19
      $region24: #{tpu_custom_call.1} parent=15 // pred_fallthru
        _
    $region16: #{tpu_custom_call.1} parent=5 // pred_fallthru
      _
    %p182 = scmp.le.s32.totalorder 1, %s10
    %p183 = scmp.lt.s32.totalorder %s10, 3
    %p184 = pnand %p182, %p183
    %p185 = pneg %p184
    // Predicated region
    $region25: #{tpu_custom_call.1} parent=5 // pred_check
      _
    $region26: #{tpu_custom_call.1} parent=5 // pred_check_branch
      %187 = sbr.rel (%p184) target = $region28
    $region27: #{tpu_custom_call.1} parent=5 // pred_region
      %s188 = ssub.s32 %s10, 1
      %s189 = smul.u32 20, %s21
      %p190 = scmp.lt.s32.totalorder %s20, 1
      %s191 = scalar_select %p190, %s20, 1
      %p192 = scmp.lt.s32.totalorder %s189, 19
      %s193 = scalar_select %p192, %s189, 19
      %s194 = smul.addr %s191, 20
      %s195 = sadd.s32 %s193, %s194
      %s196 = smul.addr %s195, 8
      %s197 = scalar_lea.vmem %s0, %s196
      %p198 = pneg %p57
      %p199 = pneg %p54
      %s200 = smul.u32 32, %s22
      %p201 = scmp.lt.s32.totalorder %s20, 1
      %s202 = scalar_select %p201, %s20, 1
      %p203 = scmp.lt.s32.totalorder %s200, 31
      %s204 = scalar_select %p203, %s200, 31
      %s205 = smul.addr %s202, 32
      %s206 = sadd.s32 %s204, %s205
      %s207 = smul.addr %s206, 8
      %s208 = scalar_lea.vmem %s1, %s207
      %p209 = pneg %p85
      %p210 = pneg %p82
      %p211 = pneg %p111
      %p212 = pneg %p108
      %p213 = scmp.lt.s32.totalorder %s20, 1
      %s214 = scalar_select %p213, %s20, 1
      %s215 = scalar_lea.vmem %s2, %s214
      %p216 = pneg %p137
      %p217 = pneg %p134
      %p218 = scmp.lt.s32.totalorder %s20, 1
      %s219 = scalar_select %p218, %s20, 1
      %s220 = scalar_lea.vmem %s3, %s219
      %s221 = smul.u32 20, %s21
      %p222 = scmp.lt.s32.totalorder %s20, 1
      %s223 = scalar_select %p222, %s20, 1
      %p224 = scmp.lt.s32.totalorder %s221, 19
      %s225 = scalar_select %p224, %s221, 19
      %s226 = smul.addr %s223, 20
      %s227 = sadd.s32 %s225, %s226
      %s228 = smul.addr %s227, 8
      %s229 = scalar_lea.vmem %s0, %s228
      %s230 = smul.u32 20, %s21
      %s231 = smul.u32 32, %s22
      %p232 = scmp.lt.s32.totalorder %s20, 1
      %s233 = scalar_select %p232, %s20, 1
      %p234 = scmp.lt.s32.totalorder %s231, 31
      %s235 = scalar_select %p234, %s231, 31
      %s236 = smul.addr %s233, 32
      %s237 = sadd.s32 %s235, %s236
      %s238 = smul.addr %s237, 8
      %s239 = scalar_lea.vmem %s1, %s238
      %s240 = smul.u32 32, %s22
      %p241 = scmp.lt.s32.totalorder %s20, 1
      %s242 = scalar_select %p241, %s20, 1
      %s243 = scalar_lea.vmem %s2, %s242
      %p244 = scmp.lt.s32.totalorder %s20, 1
      %s245 = scalar_select %p244, %s20, 1
      %s246 = scalar_lea.vmem %s3, %s245
      %v247 = vld [vmem:[%s229] sm:$0xff]
      %v248 = vld [vmem:[%s229 + $0x8] sm:$0xff]
      %v249 = vld [vmem:[%s229 + $0x10] sm:$0xff]
      %v250 = vld [vmem:[%s229 + $0x18] sm:$0xff]
      %v251 = vld [vmem:[%s229 + $0x20] sm:$0xff]
      %v252 = vld [vmem:[%s229 + $0x28] sm:$0xff]
      %v253 = vld [vmem:[%s229 + $0x30] sm:$0xff]
      %v254 = vld [vmem:[%s229 + $0x38] sm:$0xff]
      %v255 = vld [vmem:[%s229 + $0x40] sm:$0xff]
      %v256 = vld [vmem:[%s229 + $0x48] sm:$0xff]
      %v257 = vld [vmem:[%s229 + $0x50] sm:$0xff]
      %v258 = vld [vmem:[%s229 + $0x58] sm:$0xff]
      %v259 = vld [vmem:[%s229 + $0x60] sm:$0xff]
      %v260 = vld [vmem:[%s229 + $0x68] sm:$0xff]
      %v261 = vld [vmem:[%s229 + $0x70] sm:$0xff]
      %v262 = vld [vmem:[%s229 + $0x78] sm:$0xff]
      %v263 = vld [vmem:[%s229 + $0x80] sm:$0xff]
      %v264 = vld [vmem:[%s229 + $0x88] sm:$0xff]
      %v265 = vld [vmem:[%s229 + $0x90] sm:$0xff]
      %v266 = vld [vmem:[%s229 + $0x98] sm:$0xff]
      %v267 = vld [vmem:[%s239] sm:$0xff]
      %v268 = vld [vmem:[%s239 + $0x8] sm:$0xff]
      %v269 = vld [vmem:[%s239 + $0x10] sm:$0xff]
      %v270 = vld [vmem:[%s239 + $0x18] sm:$0xff]
      %v271 = vld [vmem:[%s239 + $0x20] sm:$0xff]
      %v272 = vld [vmem:[%s239 + $0x28] sm:$0xff]
      %v273 = vld [vmem:[%s239 + $0x30] sm:$0xff]
      %v274 = vld [vmem:[%s239 + $0x38] sm:$0xff]
      %v275 = vld [vmem:[%s239 + $0x40] sm:$0xff]
      %v276 = vld [vmem:[%s239 + $0x48] sm:$0xff]
      %v277 = vld [vmem:[%s239 + $0x50] sm:$0xff]
      %v278 = vld [vmem:[%s239 + $0x58] sm:$0xff]
      %v279 = vld [vmem:[%s239 + $0x60] sm:$0xff]
      %v280 = vld [vmem:[%s239 + $0x68] sm:$0xff]
      %v281 = vld [vmem:[%s239 + $0x70] sm:$0xff]
      %v282 = vld [vmem:[%s239 + $0x78] sm:$0xff]
      %v283 = vld [vmem:[%s239 + $0x80] sm:$0xff]
      %v284 = vld [vmem:[%s239 + $0x88] sm:$0xff]
      %v285 = vld [vmem:[%s239 + $0x90] sm:$0xff]
      %v286 = vld [vmem:[%s239 + $0x98] sm:$0xff]
      %v287 = vld [vmem:[%s239 + $0xa0] sm:$0xff]
      %v288 = vld [vmem:[%s239 + $0xa8] sm:$0xff]
      %v289 = vld [vmem:[%s239 + $0xb0] sm:$0xff]
      %v290 = vld [vmem:[%s239 + $0xb8] sm:$0xff]
      %v291 = vld [vmem:[%s239 + $0xc0] sm:$0xff]
      %v292 = vld [vmem:[%s239 + $0xc8] sm:$0xff]
      %v293 = vld [vmem:[%s239 + $0xd0] sm:$0xff]
      %v294 = vld [vmem:[%s239 + $0xd8] sm:$0xff]
      %v295 = vld [vmem:[%s239 + $0xe0] sm:$0xff]
      %v296 = vld [vmem:[%s239 + $0xe8] sm:$0xff]
      %v297 = vld [vmem:[%s239 + $0xf0] sm:$0xff]
      %v298 = vld [vmem:[%s239 + $0xf8] sm:$0xff]
      %vm299 = vcmask 64512
      %v301 = vsel %vm299, %v247, 0
      %v304 = vsel %vm299, %v248, 0
      %v307 = vsel %vm299, %v249, 0
      %v310 = vsel %vm299, %v250, 0
      %v313 = vsel %vm299, %v251, 0
      %v316 = vsel %vm299, %v252, 0
      %v319 = vsel %vm299, %v253, 0
      %v322 = vsel %vm299, %v254, 0
      %v325 = vsel %vm299, %v255, 0
      %v328 = vsel %vm299, %v256, 0
      %v331 = vsel %vm299, %v257, 0
      %v334 = vsel %vm299, %v258, 0
      %v337 = vsel %vm299, %v259, 0
      %v340 = vsel %vm299, %v260, 0
      %v343 = vsel %vm299, %v261, 0
      %v346 = vsel %vm299, %v262, 0
      %v349 = vsel %vm299, %v263, 0
      %v352 = vsel %vm299, %v264, 0
      %v355 = vsel %vm299, %v265, 0
      %v358 = vsel %vm299, %v266, 0
      %v361 = vsel %vm299, %v267, 0
      %v364 = vsel %vm299, %v268, 0
      %v367 = vsel %vm299, %v269, 0
      %v370 = vsel %vm299, %v270, 0
      %v373 = vsel %vm299, %v271, 0
      %v376 = vsel %vm299, %v272, 0
      %v379 = vsel %vm299, %v273, 0
      %v382 = vsel %vm299, %v274, 0
      %v385 = vsel %vm299, %v275, 0
      %v388 = vsel %vm299, %v276, 0
      %v391 = vsel %vm299, %v277, 0
      %v394 = vsel %vm299, %v278, 0
      %v397 = vsel %vm299, %v279, 0
      %v400 = vsel %vm299, %v280, 0
      %v403 = vsel %vm299, %v281, 0
      %v406 = vsel %vm299, %v282, 0
      %v409 = vsel %vm299, %v283, 0
      %v412 = vsel %vm299, %v284, 0
      %v415 = vsel %vm299, %v285, 0
      %v418 = vsel %vm299, %v286, 0
      %v421 = vsel %vm299, %v287, 0
      %v424 = vsel %vm299, %v288, 0
      %v427 = vsel %vm299, %v289, 0
      %v430 = vsel %vm299, %v290, 0
      %v433 = vsel %vm299, %v291, 0
      %v436 = vsel %vm299, %v292, 0
      %v439 = vsel %vm299, %v293, 0
      %v442 = vsel %vm299, %v294, 0
      %v445 = vsel %vm299, %v295, 0
      %v448 = vsel %vm299, %v296, 0
      %v451 = vsel %vm299, %v297, 0
      %v454 = vsel %vm299, %v298, 0
      %456 = vmatprep.subr.mxu0 0.0
      %457 = vmatpush1.xpose.msra.mxu0 %v406
      %458 = vmatprep.subr.mxu0 0.0
      %459 = vmatpush1.xpose.msra.mxu0 %v403
      %460 = vmatprep.subr.mxu0 0.0
      %461 = vmatpush1.xpose.msra.mxu0 %v400
      %462 = vmatprep.subr.mxu0 0.0
      %463 = vmatpush1.xpose.msra.mxu0 %v397
      %464 = vmatprep.subr.mxu0 0.0
      %465 = vmatpush1.xpose.msra.mxu0 %v394
      %466 = vmatprep.subr.mxu0 0.0
      %467 = vmatpush1.xpose.msra.mxu0 %v391
      %468 = vmatprep.subr.mxu0 0.0
      %469 = vmatpush1.xpose.msra.mxu0 %v388
      %470 = vmatprep.subr.mxu0 0.0
      %471 = vmatpush1.xpose.msra.mxu0 %v385
      %472 = vmatprep.subr.mxu0 0.0
      %473 = vmatpush1.xpose.msra.mxu0 %v382
      %474 = vmatprep.subr.mxu0 0.0
      %475 = vmatpush1.xpose.msra.mxu0 %v379
      %476 = vmatprep.subr.mxu0 0.0
      %477 = vmatpush1.xpose.msra.mxu0 %v376
      %478 = vmatprep.subr.mxu0 0.0
      %479 = vmatpush1.xpose.msra.mxu0 %v373
      %480 = vmatprep.subr.mxu0 0.0
      %481 = vmatpush1.xpose.msra.mxu0 %v370
      %482 = vmatprep.subr.mxu0 0.0
      %483 = vmatpush1.xpose.msra.mxu0 %v367
      %484 = vmatprep.subr.mxu0 0.0
      %485 = vmatpush1.xpose.msra.mxu0 %v364
      %486 = vmatprep.subr.mxu0 0.0
      %487 = vmatpush1.xpose.msra.mxu0 %v361
      %488 = vmatprep.subr.mxu0 0.0
      %489 = vmatpush2.xpose.msra.mxu0 %v454
      %490 = vmatprep.subr.mxu0 0.0
      %491 = vmatpush2.xpose.msra.mxu0 %v451
      %492 = vmatprep.subr.mxu0 0.0
      %493 = vmatpush2.xpose.msra.mxu0 %v448
      %494 = vmatprep.subr.mxu0 0.0
      %495 = vmatpush2.xpose.msra.mxu0 %v445
      %496 = vmatprep.subr.mxu0 0.0
      %497 = vmatpush2.xpose.msra.mxu0 %v442
      %498 = vmatprep.subr.mxu0 0.0
      %499 = vmatpush2.xpose.msra.mxu0 %v439
      %500 = vmatprep.subr.mxu0 0.0
      %501 = vmatpush2.xpose.msra.mxu0 %v436
      %502 = vmatprep.subr.mxu0 0.0
      %503 = vmatpush2.xpose.msra.mxu0 %v433
      %504 = vmatprep.subr.mxu0 0.0
      %505 = vmatpush2.xpose.msra.mxu0 %v430
      %506 = vmatprep.subr.mxu0 0.0
      %507 = vmatpush2.xpose.msra.mxu0 %v427
      %508 = vmatprep.subr.mxu0 0.0
      %509 = vmatpush2.xpose.msra.mxu0 %v424
      %510 = vmatprep.subr.mxu0 0.0
      %511 = vmatpush2.xpose.msra.mxu0 %v421
      %512 = vmatprep.subr.mxu0 0.0
      %513 = vmatpush2.xpose.msra.mxu0 %v418
      %514 = vmatprep.subr.mxu0 0.0
      %515 = vmatpush2.xpose.msra.mxu0 %v415
      %516 = vmatprep.subr.mxu0 0.0
      %517 = vmatpush2.xpose.msra.mxu0 %v412
      %518 = vmatprep.subr.mxu0 0.0
      %519 = vmatpush2.xpose.msra.mxu0 %v409
      %520 = vmatprep.mubr.f32.mxu0 0.0
      %521 = vmatmul.mubr.f32.gmra.mxu0 %v301
      %v522 = vpop.f32.mrf.mxu0
      %v523 = vadd.f32 0.0, %v522
      %v524 = vpop.f32.mrf.mxu0
      %v525 = vadd.f32 0.0, %v524
      %526 = vmatprep.mubr.f32.mxu0 0.0
      %527 = vmatmul.mubr.f32.gmra.mxu0 %v304
      %v528 = vpop.f32.mrf.mxu0
      %v529 = vadd.f32 0.0, %v528
      %v530 = vpop.f32.mrf.mxu0
      %v531 = vadd.f32 0.0, %v530
      %532 = vmatprep.mubr.f32.mxu0 0.0
      %533 = vmatmul.mubr.f32.gmra.mxu0 %v307
      %v534 = vpop.f32.mrf.mxu0
      %v535 = vadd.f32 0.0, %v534
      %v536 = vpop.f32.mrf.mxu0
      %v537 = vadd.f32 0.0, %v536
      %538 = vmatprep.mubr.f32.mxu0 0.0
      %539 = vmatmul.mubr.f32.gmra.mxu0 %v310
      %v540 = vpop.f32.mrf.mxu0
      %v541 = vadd.f32 0.0, %v540
      %v542 = vpop.f32.mrf.mxu0
      %v543 = vadd.f32 0.0, %v542
      %544 = vmatprep.mubr.f32.mxu0 0.0
      %545 = vmatmul.mubr.f32.gmra.mxu0 %v313
      %v546 = vpop.f32.mrf.mxu0
      %v547 = vadd.f32 0.0, %v546
      %v548 = vpop.f32.mrf.mxu0
      %v549 = vadd.f32 0.0, %v548
      %550 = vmatprep.mubr.f32.mxu0 0.0
      %551 = vmatmul.mubr.f32.gmra.mxu0 %v316
      %v552 = vpop.f32.mrf.mxu0
      %v553 = vadd.f32 0.0, %v552
      %v554 = vpop.f32.mrf.mxu0
      %v555 = vadd.f32 0.0, %v554
      %556 = vmatprep.mubr.f32.mxu0 0.0
      %557 = vmatmul.mubr.f32.gmra.mxu0 %v319
      %v558 = vpop.f32.mrf.mxu0
      %v559 = vadd.f32 0.0, %v558
      %v560 = vpop.f32.mrf.mxu0
      %v561 = vadd.f32 0.0, %v560
      %562 = vmatprep.mubr.f32.mxu0 0.0
      %563 = vmatmul.mubr.f32.gmra.mxu0 %v322
      %v564 = vpop.f32.mrf.mxu0
      %v565 = vadd.f32 0.0, %v564
      %v566 = vpop.f32.mrf.mxu0
      %v567 = vadd.f32 0.0, %v566
      %568 = vmatprep.mubr.f32.mxu0 0.0
      %569 = vmatmul.mubr.f32.gmra.mxu0 %v325
      %v570 = vpop.f32.mrf.mxu0
      %v571 = vadd.f32 0.0, %v570
      %v572 = vpop.f32.mrf.mxu0
      %v573 = vadd.f32 0.0, %v572
      %574 = vmatprep.mubr.f32.mxu0 0.0
      %575 = vmatmul.mubr.f32.gmra.mxu0 %v328
      %v576 = vpop.f32.mrf.mxu0
      %v577 = vadd.f32 0.0, %v576
      %v578 = vpop.f32.mrf.mxu0
      %v579 = vadd.f32 0.0, %v578
      %580 = vmatprep.mubr.f32.mxu0 0.0
      %581 = vmatmul.mubr.f32.gmra.mxu0 %v331
      %v582 = vpop.f32.mrf.mxu0
      %v583 = vadd.f32 0.0, %v582
      %v584 = vpop.f32.mrf.mxu0
      %v585 = vadd.f32 0.0, %v584
      %586 = vmatprep.mubr.f32.mxu0 0.0
      %587 = vmatmul.mubr.f32.gmra.mxu0 %v334
      %v588 = vpop.f32.mrf.mxu0
      %v589 = vadd.f32 0.0, %v588
      %v590 = vpop.f32.mrf.mxu0
      %v591 = vadd.f32 0.0, %v590
      %592 = vmatprep.mubr.f32.mxu0 0.0
      %593 = vmatmul.mubr.f32.gmra.mxu0 %v337
      %v594 = vpop.f32.mrf.mxu0
      %v595 = vadd.f32 0.0, %v594
      %v596 = vpop.f32.mrf.mxu0
      %v597 = vadd.f32 0.0, %v596
      %598 = vmatprep.mubr.f32.mxu0 0.0
      %599 = vmatmul.mubr.f32.gmra.mxu0 %v340
      %v600 = vpop.f32.mrf.mxu0
      %v601 = vadd.f32 0.0, %v600
      %v602 = vpop.f32.mrf.mxu0
      %v603 = vadd.f32 0.0, %v602
      %604 = vmatprep.mubr.f32.mxu0 0.0
      %605 = vmatmul.mubr.f32.gmra.mxu0 %v343
      %v606 = vpop.f32.mrf.mxu0
      %v607 = vadd.f32 0.0, %v606
      %v608 = vpop.f32.mrf.mxu0
      %v609 = vadd.f32 0.0, %v608
      %610 = vmatprep.mubr.f32.mxu0 0.0
      %611 = vmatmul.mubr.f32.gmra.mxu0 %v346
      %v612 = vpop.f32.mrf.mxu0
      %v613 = vadd.f32 0.0, %v612
      %v614 = vpop.f32.mrf.mxu0
      %v615 = vadd.f32 0.0, %v614
      %616 = vmatprep.mubr.f32.mxu0 0.0
      %617 = vmatmul.mubr.f32.gmra.mxu0 %v349
      %v618 = vpop.f32.mrf.mxu0
      %v619 = vadd.f32 0.0, %v618
      %v620 = vpop.f32.mrf.mxu0
      %v621 = vadd.f32 0.0, %v620
      %622 = vmatprep.mubr.f32.mxu0 0.0
      %623 = vmatmul.mubr.f32.gmra.mxu0 %v352
      %v624 = vpop.f32.mrf.mxu0
      %v625 = vadd.f32 0.0, %v624
      %v626 = vpop.f32.mrf.mxu0
      %v627 = vadd.f32 0.0, %v626
      %628 = vmatprep.mubr.f32.mxu0 0.0
      %629 = vmatmul.mubr.f32.gmra.mxu0 %v355
      %v630 = vpop.f32.mrf.mxu0
      %v631 = vadd.f32 0.0, %v630
      %v632 = vpop.f32.mrf.mxu0
      %v633 = vadd.f32 0.0, %v632
      %634 = vmatprep.mubr.f32.mxu0 0.0
      %635 = vmatmul.mubr.f32.gmra.mxu0 %v358
      %v636 = vpop.f32.mrf.mxu0
      %v637 = vadd.f32 0.0, %v636
      %v638 = vpop.f32.mrf.mxu0
      %v639 = vadd.f32 0.0, %v638
      %640 = vdwg.mxu0
      %p641 = scmp.eq.s32.totalorder %s21, 0
      %p642 = scmp.eq.s32.totalorder %s22, 0
      %p643 = pnand %p641, %p642
      %p644 = pneg %p643
      // Predicated region
      $region29: #{tpu_custom_call.1} parent=27 // pred_check
        _
      $region30: #{tpu_custom_call.1} parent=27 // pred_check_branch
        %646 = sbr.rel (%p643) target = $region32
      $region31: #{tpu_custom_call.1} parent=27 // pred_region
        %vm647 = vcmask 0
        %648 = vst.msk [vmem:[%s243] sm:$0x1] %vm647, 0.0
        %649 = vst.msk [vmem:[%s246] sm:$0x1] %vm647, 0.0
      $region32: #{tpu_custom_call.1} parent=27 // pred_fallthru
        _
      %v650 = vmin.f32 %v523, %v525
      %v651 = vmin.f32 %v529, %v531
      %v652 = vmin.f32 %v535, %v537
      %v653 = vmin.f32 %v541, %v543
      %v654 = vmin.f32 %v547, %v549
      %v655 = vmin.f32 %v553, %v555
      %v656 = vmin.f32 %v559, %v561
      %v657 = vmin.f32 %v565, %v567
      %v658 = vmin.f32 %v571, %v573
      %v659 = vmin.f32 %v577, %v579
      %v660 = vmin.f32 %v583, %v585
      %v661 = vmin.f32 %v589, %v591
      %v662 = vmin.f32 %v595, %v597
      %v663 = vmin.f32 %v601, %v603
      %v664 = vmin.f32 %v607, %v609
      %v665 = vmin.f32 %v613, %v615
      %v666 = vmin.f32 %v619, %v621
      %v667 = vmin.f32 %v625, %v627
      %v668 = vmin.f32 %v631, %v633
      %v669 = vmin.f32 %v637, %v639
      // Predicated region
      $region33: #{tpu_custom_call.1} parent=27 // pred_check
        %p670 = pneg %p642
      $region34: #{tpu_custom_call.1} parent=27 // pred_check_branch
        %672 = sbr.rel (%p670) target = $region36
      $region35: #{tpu_custom_call.1} parent=27 // pred_region
        %673 = vst [vmem:[#allocation2] sm:$0xff] %v650
        %674 = vst [vmem:[#allocation2 + $0x8] sm:$0xff] %v651
        %675 = vst [vmem:[#allocation2 + $0x10] sm:$0xff] %v652
        %676 = vst [vmem:[#allocation2 + $0x18] sm:$0xff] %v653
        %677 = vst [vmem:[#allocation2 + $0x20] sm:$0xff] %v654
        %678 = vst [vmem:[#allocation2 + $0x28] sm:$0xff] %v655
        %679 = vst [vmem:[#allocation2 + $0x30] sm:$0xff] %v656
        %680 = vst [vmem:[#allocation2 + $0x38] sm:$0xff] %v657
        %681 = vst [vmem:[#allocation2 + $0x40] sm:$0xff] %v658
        %682 = vst [vmem:[#allocation2 + $0x48] sm:$0xff] %v659
        %683 = vst [vmem:[#allocation2 + $0x50] sm:$0xff] %v660
        %684 = vst [vmem:[#allocation2 + $0x58] sm:$0xff] %v661
        %685 = vst [vmem:[#allocation2 + $0x60] sm:$0xff] %v662
        %686 = vst [vmem:[#allocation2 + $0x68] sm:$0xff] %v663
        %687 = vst [vmem:[#allocation2 + $0x70] sm:$0xff] %v664
        %688 = vst [vmem:[#allocation2 + $0x78] sm:$0xff] %v665
        %689 = vst [vmem:[#allocation2 + $0x80] sm:$0xff] %v666
        %690 = vst [vmem:[#allocation2 + $0x88] sm:$0xff] %v667
        %691 = vst [vmem:[#allocation2 + $0x90] sm:$0xff] %v668
        %692 = vst [vmem:[#allocation2 + $0x98] sm:$0xff] %v669
      $region36: #{tpu_custom_call.1} parent=27 // pred_fallthru
        _
      %p693 = scmp.gt.s32.totalorder %s22, 0
      // Predicated region
      $region37: #{tpu_custom_call.1} parent=27 // pred_check
        %p694 = pneg %p693
      $region38: #{tpu_custom_call.1} parent=27 // pred_check_branch
        %696 = sbr.rel (%p694) target = $region40
      $region39: #{tpu_custom_call.1} parent=27 // pred_region
        %v697 = vld [vmem:[#allocation2] sm:$0xff]
        %v698 = vld [vmem:[#allocation2 + $0x8] sm:$0xff]
        %v699 = vld [vmem:[#allocation2 + $0x10] sm:$0xff]
        %v700 = vld [vmem:[#allocation2 + $0x18] sm:$0xff]
        %v701 = vld [vmem:[#allocation2 + $0x20] sm:$0xff]
        %v702 = vld [vmem:[#allocation2 + $0x28] sm:$0xff]
        %v703 = vld [vmem:[#allocation2 + $0x30] sm:$0xff]
        %v704 = vld [vmem:[#allocation2 + $0x38] sm:$0xff]
        %v705 = vld [vmem:[#allocation2 + $0x40] sm:$0xff]
        %v706 = vld [vmem:[#allocation2 + $0x48] sm:$0xff]
        %v707 = vld [vmem:[#allocation2 + $0x50] sm:$0xff]
        %v708 = vld [vmem:[#allocation2 + $0x58] sm:$0xff]
        %v709 = vld [vmem:[#allocation2 + $0x60] sm:$0xff]
        %v710 = vld [vmem:[#allocation2 + $0x68] sm:$0xff]
        %v711 = vld [vmem:[#allocation2 + $0x70] sm:$0xff]
        %v712 = vld [vmem:[#allocation2 + $0x78] sm:$0xff]
        %v713 = vld [vmem:[#allocation2 + $0x80] sm:$0xff]
        %v714 = vld [vmem:[#allocation2 + $0x88] sm:$0xff]
        %v715 = vld [vmem:[#allocation2 + $0x90] sm:$0xff]
        %v716 = vld [vmem:[#allocation2 + $0x98] sm:$0xff]
        %v717 = vmin.f32 %v697, %v650
        %v718 = vmin.f32 %v698, %v651
        %v719 = vmin.f32 %v699, %v652
        %v720 = vmin.f32 %v700, %v653
        %v721 = vmin.f32 %v701, %v654
        %v722 = vmin.f32 %v702, %v655
        %v723 = vmin.f32 %v703, %v656
        %v724 = vmin.f32 %v704, %v657
        %v725 = vmin.f32 %v705, %v658
        %v726 = vmin.f32 %v706, %v659
        %v727 = vmin.f32 %v707, %v660
        %v728 = vmin.f32 %v708, %v661
        %v729 = vmin.f32 %v709, %v662
        %v730 = vmin.f32 %v710, %v663
        %v731 = vmin.f32 %v711, %v664
        %v732 = vmin.f32 %v712, %v665
        %v733 = vmin.f32 %v713, %v666
        %v734 = vmin.f32 %v714, %v667
        %v735 = vmin.f32 %v715, %v668
        %v736 = vmin.f32 %v716, %v669
        %737 = vst [vmem:[#allocation2] sm:$0xff] %v717
        %738 = vst [vmem:[#allocation2 + $0x8] sm:$0xff] %v718
        %739 = vst [vmem:[#allocation2 + $0x10] sm:$0xff] %v719
        %740 = vst [vmem:[#allocation2 + $0x18] sm:$0xff] %v720
        %741 = vst [vmem:[#allocation2 + $0x20] sm:$0xff] %v721
        %742 = vst [vmem:[#allocation2 + $0x28] sm:$0xff] %v722
        %743 = vst [vmem:[#allocation2 + $0x30] sm:$0xff] %v723
        %744 = vst [vmem:[#allocation2 + $0x38] sm:$0xff] %v724
        %745 = vst [vmem:[#allocation2 + $0x40] sm:$0xff] %v725
        %746 = vst [vmem:[#allocation2 + $0x48] sm:$0xff] %v726
        %747 = vst [vmem:[#allocation2 + $0x50] sm:$0xff] %v727
        %748 = vst [vmem:[#allocation2 + $0x58] sm:$0xff] %v728
        %749 = vst [vmem:[#allocation2 + $0x60] sm:$0xff] %v729
        %750 = vst [vmem:[#allocation2 + $0x68] sm:$0xff] %v730
        %751 = vst [vmem:[#allocation2 + $0x70] sm:$0xff] %v731
        %752 = vst [vmem:[#allocation2 + $0x78] sm:$0xff] %v732
        %753 = vst [vmem:[#allocation2 + $0x80] sm:$0xff] %v733
        %754 = vst [vmem:[#allocation2 + $0x88] sm:$0xff] %v734
        %755 = vst [vmem:[#allocation2 + $0x90] sm:$0xff] %v735
        %756 = vst [vmem:[#allocation2 + $0x98] sm:$0xff] %v736
      $region40: #{tpu_custom_call.1} parent=27 // pred_fallthru
        _
      %v757 = vmin.f32 %v523, %v535
      %v758 = vmin.f32 %v529, %v541
      %v759 = vmin.f32 %v757, %v547
      %v760 = vmin.f32 %v758, %v553
      %v761 = vmin.f32 %v759, %v559
      %v762 = vmin.f32 %v760, %v565
      %v763 = vmin.f32 %v761, %v571
      %v764 = vmin.f32 %v762, %v577
      %v765 = vmin.f32 %v763, %v583
      %v766 = vmin.f32 %v764, %v589
      %v767 = vmin.f32 %v765, %v595
      %v768 = vmin.f32 %v766, %v601
      %v769 = vmin.f32 %v767, %v607
      %v770 = vmin.f32 %v768, %v613
      %v771 = vmin.f32 %v769, %v619
      %v772 = vmin.f32 %v770, %v625
      %v773 = vmin.f32 %v771, %v631
      %v774 = vmin.f32 %v772, %v637
      %v775 = vmin.f32 %v773, %v774
      %v776 = vrot.slane %v775, 4
      %v777 = vmin.f32 %v775, %v776
      %v778 = vrot.slane %v777, 2
      %v779 = vmin.f32 %v777, %v778
      %v780 = vrot.slane %v779, 1
      %v781 = vmin.f32 %v779, %v780
      %v782 = vmin.f32 %v525, %v537
      %v783 = vmin.f32 %v531, %v543
      %v784 = vmin.f32 %v782, %v549
      %v785 = vmin.f32 %v783, %v555
      %v786 = vmin.f32 %v784, %v561
      %v787 = vmin.f32 %v785, %v567
      %v788 = vmin.f32 %v786, %v573
      %v789 = vmin.f32 %v787, %v579
      %v790 = vmin.f32 %v788, %v585
      %v791 = vmin.f32 %v789, %v591
      %v792 = vmin.f32 %v790, %v597
      %v793 = vmin.f32 %v791, %v603
      %v794 = vmin.f32 %v792, %v609
      %v795 = vmin.f32 %v793, %v615
      %v796 = vmin.f32 %v794, %v621
      %v797 = vmin.f32 %v795, %v627
      %v798 = vmin.f32 %v796, %v633
      %v799 = vmin.f32 %v797, %v639
      %v800 = vmin.f32 %v798, %v799
      %v801 = vrot.slane %v800, 4
      %v802 = vmin.f32 %v800, %v801
      %v803 = vrot.slane %v802, 2
      %v804 = vmin.f32 %v802, %v803
      %v805 = vrot.slane %v804, 1
      %v806 = vmin.f32 %v804, %v805
      // Predicated region
      $region41: #{tpu_custom_call.1} parent=27 // pred_check
        %p807 = pneg %p641
      $region42: #{tpu_custom_call.1} parent=27 // pred_check_branch
        %809 = sbr.rel (%p807) target = $region44
      $region43: #{tpu_custom_call.1} parent=27 // pred_region
        %v812 = vcombine.low %v781, %v806
        %v814 = vunpack.c.l.s4 1966171168
        %v815 = vunpack.c.0.s8 %v814
        %v816 = vlaneseq
        %v817 = vshrl.u32 %v816, 7
        %v818 = vsub.s32 %v815, %v817
        %v819 = vrot.slane %v812, %v818
        %v821 = vunpack.c.l.s4 1966171168
        %v822 = vunpack.c.0.s8 %v821
        %v823 = vlaneseq
        %v824 = vshrl.u32 %v823, 7
        %v825 = vsub.s32 %v822, %v824
        %v826 = vrot.slane %v819, %v825
        %s828 = smul.u32 %s22, 2
        %s829 = scalar_lea.vmem [#allocation3], %s828
        %v830 = vlaneseq
        %vm831 = vcmp.ge.s32.totalorder %v830, 0
        %vm832 = vcmp.lt.s32.totalorder %v830, 256
        %vm833 = vmand %vm831, %vm832
        %834 = vst.msk [vmem:[%s829] sm:$0x3] %vm833, %v826
      $region44: #{tpu_custom_call.1} parent=27 // pred_fallthru
        _
      %p835 = scmp.gt.s32.totalorder %s21, 0
      // Predicated region
      $region45: #{tpu_custom_call.1} parent=27 // pred_check
        %p836 = pneg %p835
      $region46: #{tpu_custom_call.1} parent=27 // pred_check_branch
        %838 = sbr.rel (%p836) target = $region48
      $region47: #{tpu_custom_call.1} parent=27 // pred_region
        %s839 = smul.u32 %s22, 2
        %s840 = scalar_lea.vmem [#allocation3], %s839
        %v841 = vld [vmem:[%s840] sm:$0x3]
        %v844 = vcombine.low %v781, %v806
        %v846 = vunpack.c.l.s4 1966171168
        %v847 = vunpack.c.0.s8 %v846
        %v848 = vlaneseq
        %v849 = vshrl.u32 %v848, 7
        %v850 = vsub.s32 %v847, %v849
        %v851 = vrot.slane %v844, %v850
        %v853 = vunpack.c.l.s4 1966171168
        %v854 = vunpack.c.0.s8 %v853
        %v855 = vlaneseq
        %v856 = vshrl.u32 %v855, 7
        %v857 = vsub.s32 %v854, %v856
        %v858 = vrot.slane %v851, %v857
        %v860 = vmin.f32 %v841, %v858
        %v861 = vlaneseq
        %vm862 = vcmp.ge.s32.totalorder %v861, 0
        %vm863 = vcmp.lt.s32.totalorder %v861, 256
        %vm864 = vmand %vm862, %vm863
        %865 = vst.msk [vmem:[%s840] sm:$0x3] %vm864, %v860
      $region48: #{tpu_custom_call.1} parent=27 // pred_fallthru
        _
      // Predicated region
      $region49: #{tpu_custom_call.1} parent=27 // pred_check
        %p866 = pneg %p642
      $region50: #{tpu_custom_call.1} parent=27 // pred_check_branch
        %868 = sbr.rel (%p866) target = $region52
      $region51: #{tpu_custom_call.1} parent=27 // pred_region
        %v869 = vld [vmem:[#allocation2] sm:$0xff]
        %v870 = vld [vmem:[#allocation2 + $0x8] sm:$0xff]
        %v871 = vld [vmem:[#allocation2 + $0x10] sm:$0xff]
        %v872 = vld [vmem:[#allocation2 + $0x18] sm:$0xff]
        %v873 = vld [vmem:[#allocation2 + $0x20] sm:$0xff]
        %v874 = vld [vmem:[#allocation2 + $0x28] sm:$0xff]
        %v875 = vld [vmem:[#allocation2 + $0x30] sm:$0xff]
        %v876 = vld [vmem:[#allocation2 + $0x38] sm:$0xff]
        %v877 = vld [vmem:[#allocation2 + $0x40] sm:$0xff]
        %v878 = vld [vmem:[#allocation2 + $0x48] sm:$0xff]
        %v879 = vld [vmem:[#allocation2 + $0x50] sm:$0xff]
        %v880 = vld [vmem:[#allocation2 + $0x58] sm:$0xff]
        %v881 = vld [vmem:[#allocation2 + $0x60] sm:$0xff]
        %v882 = vld [vmem:[#allocation2 + $0x68] sm:$0xff]
        %v883 = vld [vmem:[#allocation2 + $0x70] sm:$0xff]
        %v884 = vld [vmem:[#allocation2 + $0x78] sm:$0xff]
        %v885 = vld [vmem:[#allocation2 + $0x80] sm:$0xff]
        %v886 = vld [vmem:[#allocation2 + $0x88] sm:$0xff]
        %v887 = vld [vmem:[#allocation2 + $0x90] sm:$0xff]
        %v888 = vld [vmem:[#allocation2 + $0x98] sm:$0xff]
        %889 = vmin.xlane.f32.xlu0 %v869
        %v890 = vpop.xlane.xlu0 %889
        %891 = vmin.xlane.f32.xlu0 %v870
        %v892 = vpop.xlane.xlu0 %891
        %893 = vmin.xlane.f32.xlu0 %v871
        %v894 = vpop.xlane.xlu0 %893
        %895 = vmin.xlane.f32.xlu0 %v872
        %v896 = vpop.xlane.xlu0 %895
        %897 = vmin.xlane.f32.xlu0 %v873
        %v898 = vpop.xlane.xlu0 %897
        %899 = vmin.xlane.f32.xlu0 %v874
        %v900 = vpop.xlane.xlu0 %899
        %901 = vmin.xlane.f32.xlu0 %v875
        %v902 = vpop.xlane.xlu0 %901
        %903 = vmin.xlane.f32.xlu0 %v876
        %v904 = vpop.xlane.xlu0 %903
        %905 = vmin.xlane.f32.xlu0 %v877
        %v906 = vpop.xlane.xlu0 %905
        %907 = vmin.xlane.f32.xlu0 %v878
        %v908 = vpop.xlane.xlu0 %907
        %909 = vmin.xlane.f32.xlu0 %v879
        %v910 = vpop.xlane.xlu0 %909
        %911 = vmin.xlane.f32.xlu0 %v880
        %v912 = vpop.xlane.xlu0 %911
        %913 = vmin.xlane.f32.xlu0 %v881
        %v914 = vpop.xlane.xlu0 %913
        %915 = vmin.xlane.f32.xlu0 %v882
        %v916 = vpop.xlane.xlu0 %915
        %917 = vmin.xlane.f32.xlu0 %v883
        %v918 = vpop.xlane.xlu0 %917
        %919 = vmin.xlane.f32.xlu0 %v884
        %v920 = vpop.xlane.xlu0 %919
        %921 = vmin.xlane.f32.xlu0 %v885
        %v922 = vpop.xlane.xlu0 %921
        %923 = vmin.xlane.f32.xlu0 %v886
        %v924 = vpop.xlane.xlu0 %923
        %925 = vmin.xlane.f32.xlu0 %v887
        %v926 = vpop.xlane.xlu0 %925
        %927 = vmin.xlane.f32.xlu0 %v888
        %v928 = vpop.xlane.xlu0 %927
        %s929 = smul.u32 %s21, 160
        %v930 = vlaneseq
        %v931 = vshrl.u32 %v930, 7
        %v932 = vadd.s32 %v931, 8
        %v933 = vadd.s32 %v931, 16
        %v934 = vadd.s32 %v931, 24
        %v935 = vadd.s32 %v931, 32
        %v936 = vadd.s32 %v931, 40
        %v937 = vadd.s32 %v931, 48
        %v938 = vadd.s32 %v931, 56
        %v939 = vadd.s32 %v931, 64
        %v940 = vadd.s32 %v931, 72
        %v941 = vadd.s32 %v931, 80
        %v942 = vadd.s32 %v931, 88
        %v943 = vadd.s32 %v931, 96
        %v944 = vadd.s32 %v931, 104
        %v945 = vadd.s32 %v931, 112
        %v946 = vadd.s32 %v931, 120
        %v947 = vadd.s32 %v931, 128
        %v948 = vadd.s32 %v931, 136
        %v949 = vadd.s32 %v931, 144
        %v950 = vadd.s32 %v931, 152
        %v951 = vstv %s929
        %v952 = vadd.s32 %v951, %v931
        %v953 = vadd.s32 %v951, %v932
        %v954 = vadd.s32 %v951, %v933
        %v955 = vadd.s32 %v951, %v934
        %v956 = vadd.s32 %v951, %v935
        %v957 = vadd.s32 %v951, %v936
        %v958 = vadd.s32 %v951, %v937
        %v959 = vadd.s32 %v951, %v938
        %v960 = vadd.s32 %v951, %v939
        %v961 = vadd.s32 %v951, %v940
        %v962 = vadd.s32 %v951, %v941
        %v963 = vadd.s32 %v951, %v942
        %v964 = vadd.s32 %v951, %v943
        %v965 = vadd.s32 %v951, %v944
        %v966 = vadd.s32 %v951, %v945
        %v967 = vadd.s32 %v951, %v946
        %v968 = vadd.s32 %v951, %v947
        %v969 = vadd.s32 %v951, %v948
        %v970 = vadd.s32 %v951, %v949
        %v971 = vadd.s32 %v951, %v950
        %vm972 = vcmp.lt.s32.totalorder %v952, 160
        %vm973 = vcmp.lt.s32.totalorder %v953, 160
        %vm974 = vcmp.lt.s32.totalorder %v954, 160
        %vm975 = vcmp.lt.s32.totalorder %v955, 160
        %vm976 = vcmp.lt.s32.totalorder %v956, 160
        %vm977 = vcmp.lt.s32.totalorder %v957, 160
        %vm978 = vcmp.lt.s32.totalorder %v958, 160
        %vm979 = vcmp.lt.s32.totalorder %v959, 160
        %vm980 = vcmp.lt.s32.totalorder %v960, 160
        %vm981 = vcmp.lt.s32.totalorder %v961, 160
        %vm982 = vcmp.lt.s32.totalorder %v962, 160
        %vm983 = vcmp.lt.s32.totalorder %v963, 160
        %vm984 = vcmp.lt.s32.totalorder %v964, 160
        %vm985 = vcmp.lt.s32.totalorder %v965, 160
        %vm986 = vcmp.lt.s32.totalorder %v966, 160
        %vm987 = vcmp.lt.s32.totalorder %v967, 160
        %vm988 = vcmp.lt.s32.totalorder %v968, 160
        %vm989 = vcmp.lt.s32.totalorder %v969, 160
        %vm990 = vcmp.lt.s32.totalorder %v970, 160
        %vm991 = vcmp.lt.s32.totalorder %v971, 160
        %v992 = vsel %vm972, %v890, 0.0
        %v993 = vsel %vm973, %v892, 0.0
        %v994 = vsel %vm974, %v894, 0.0
        %v995 = vsel %vm975, %v896, 0.0
        %v996 = vsel %vm976, %v898, 0.0
        %v997 = vsel %vm977, %v900, 0.0
        %v998 = vsel %vm978, %v902, 0.0
        %v999 = vsel %vm979, %v904, 0.0
        %v1000 = vsel %vm980, %v906, 0.0
        %v1001 = vsel %vm981, %v908, 0.0
        %v1002 = vsel %vm982, %v910, 0.0
        %v1003 = vsel %vm983, %v912, 0.0
        %v1004 = vsel %vm984, %v914, 0.0
        %v1005 = vsel %vm985, %v916, 0.0
        %v1006 = vsel %vm986, %v918, 0.0
        %v1007 = vsel %vm987, %v920, 0.0
        %v1008 = vsel %vm988, %v922, 0.0
        %v1009 = vsel %vm989, %v924, 0.0
        %v1010 = vsel %vm990, %v926, 0.0
        %v1011 = vsel %vm991, %v928, 0.0
        %v1012 = vld [vmem:[%s246] sm:$0x1]
        %v1013 = vadd.f32 %v992, %v993
        %v1014 = vadd.f32 %v1013, %v994
        %v1015 = vadd.f32 %v1014, %v995
        %v1016 = vadd.f32 %v1015, %v996
        %v1017 = vadd.f32 %v1016, %v997
        %v1018 = vadd.f32 %v1017, %v998
        %v1019 = vadd.f32 %v1018, %v999
        %v1020 = vadd.f32 %v1019, %v1000
        %v1021 = vadd.f32 %v1020, %v1001
        %v1022 = vadd.f32 %v1021, %v1002
        %v1023 = vadd.f32 %v1022, %v1003
        %v1024 = vadd.f32 %v1023, %v1004
        %v1025 = vadd.f32 %v1024, %v1005
        %v1026 = vadd.f32 %v1025, %v1006
        %v1027 = vadd.f32 %v1026, %v1007
        %v1028 = vadd.f32 %v1027, %v1008
        %v1029 = vadd.f32 %v1028, %v1009
        %v1030 = vadd.f32 %v1029, %v1010
        %v1031 = vadd.f32 %v1030, %v1011
        %v1032 = vrot.slane %v1031, 4
        %v1033 = vadd.f32 %v1031, %v1032
        %v1034 = vrot.slane %v1033, 2
        %v1035 = vadd.f32 %v1033, %v1034
        %v1036 = vrot.slane %v1035, 1
        %v1037 = vadd.f32 %v1035, %v1036
        %v1038 = vadd.f32 %v1012, %v1037
        %vm1039 = vcmask 0
        %1040 = vst.msk [vmem:[%s246] sm:$0x1] %vm1039, %v1038
      $region52: #{tpu_custom_call.1} parent=27 // pred_fallthru
        _
      // Predicated region
      $region53: #{tpu_custom_call.1} parent=27 // pred_check
        _
      $region54: #{tpu_custom_call.1} parent=27 // pred_check_branch
        %1042 = sbr.rel (%p643) target = $region56
      $region55: #{tpu_custom_call.1} parent=27 // pred_region
        %v1043 = vld [vmem:[%s246] sm:$0x1]
        %v1044 = vmul.f32 %v1043, 0.00625
        %vm1045 = vcmask 0
        %1046 = vst.msk [vmem:[%s246] sm:$0x1] %vm1045, %v1044
        %v1047 = vld [vmem:[#allocation3] sm:$0x3]
        %v1048 = vlaneseq
        %v1049 = vand.u32 %v1048, 127
        %v1050 = vadd.s32 %v1049, 128
        %vm1051 = vcmp.lt.s32.totalorder %v1049, 256
        %vm1052 = vcmp.lt.s32.totalorder %v1050, 256
        %v1054 = vlaneseq
        %v1055 = vshrl.u32 %v1054, 7
        %v1056 = vsub.s32 0, %v1055
        %v1057 = vrot.slane %v1047, %v1056
        %v1058 = vlaneseq
        %v1059 = vshrl.u32 %v1058, 7
        %v1060 = vsub.s32 1, %v1059
        %v1061 = vrot.slane %v1047, %v1060
        %v1064 = vsel %vm1051, %v1057, 0.0
        %v1065 = vsel %vm1052, %v1061, 0.0
        %v1066 = vadd.f32 %v1064, 0.0
        %v1067 = vadd.f32 %v1065, 0.0
        %vm1068 = vcmask 1040384
        %v1069 = vsel %vm1068, %v1066, 0.0
        %v1070 = vsel %vm1068, %v1067, 0.0
        %v1071 = vadd.f32 %v1069, %v1070
        %1072 = vadd.xlane.f32.xlu0 %v1071
        %v1073 = vpop.xlane.xlu0 %1072
        %v1074 = vmul.f32 %v1073, 0.00390625
        %1075 = vst.msk [vmem:[%s243] sm:$0x1] %vm1045, %v1074
      $region56: #{tpu_custom_call.1} parent=27 // pred_fallthru
        _
      %p1076 = scmp.lt.s32.totalorder %s20, 1
      %s1077 = scalar_select %p1076, %s20, 1
      %s1078 = scalar_lea.vmem %s2, %s1077
      %p1079 = scmp.lt.s32.totalorder %s20, 1
      %s1080 = scalar_select %p1079, %s20, 1
      %s1081 = scalar_lea.vmem %s3, %s1080
      // Predicated region
      $region57: #{tpu_custom_call.1} parent=27 // pred_check
        %p1082 = pneg %p108
      $region58: #{tpu_custom_call.1} parent=27 // pred_check_branch
        %1084 = sbr.rel (%p1082) target = $region60
      $region59: #{tpu_custom_call.1} parent=27 // pred_region
        _
      $region60: #{tpu_custom_call.1} parent=27 // pred_fallthru
        _
      // Predicated region
      $region61: #{tpu_custom_call.1} parent=27 // pred_check
        %p1085 = pneg %p134
      $region62: #{tpu_custom_call.1} parent=27 // pred_check_branch
        %1087 = sbr.rel (%p1085) target = $region64
      $region63: #{tpu_custom_call.1} parent=27 // pred_region
        _
      $region64: #{tpu_custom_call.1} parent=27 // pred_fallthru
        _
    $region28: #{tpu_custom_call.1} parent=5 // pred_fallthru
      _
    %p1088 = scmp.le.s32.totalorder 2, %s10
    // Predicated region
    $region65: #{tpu_custom_call.1} parent=5 // pred_check
      %p1089 = pneg %p1088
    $region66: #{tpu_custom_call.1} parent=5 // pred_check_branch
      %1091 = sbr.rel (%p1089) target = $region68
    $region67: #{tpu_custom_call.1} parent=5 // pred_region
      %s1092 = ssub.s32 %s10, 2
      // Predicated region
      $region69: #{tpu_custom_call.1} parent=67 // pred_check
        %p1093 = pneg %p114
      $region70: #{tpu_custom_call.1} parent=67 // pred_check_branch
        %1095 = sbr.rel (%p1093) target = $region72
      $region71: #{tpu_custom_call.1} parent=67 // pred_region
        %p1096 = scmp.lt.s32.totalorder %s23, 1
        %s1097 = scalar_select %p1096, %s23, 1
        %s1098 = scalar_lea.vmem %s2, %s1097
      $region72: #{tpu_custom_call.1} parent=67 // pred_fallthru
        _
      // Predicated region
      $region73: #{tpu_custom_call.1} parent=67 // pred_check
        %p1099 = pneg %p140
      $region74: #{tpu_custom_call.1} parent=67 // pred_check_branch
        %1101 = sbr.rel (%p1099) target = $region76
      $region75: #{tpu_custom_call.1} parent=67 // pred_region
        %p1102 = scmp.lt.s32.totalorder %s23, 1
        %s1103 = scalar_select %p1102, %s23, 1
        %s1104 = scalar_lea.vmem %s3, %s1103
      $region76: #{tpu_custom_call.1} parent=67 // pred_fallthru
        _
    $region68: #{tpu_custom_call.1} parent=5 // pred_fallthru
      _
  $region6: #{tpu_custom_call.1} parent=0 // loop_footer
    %s14 = sadd.s32 1, %s10
  $region7: #{tpu_custom_call.1} parent=0 // loop_footer_branch
    %9 = sbr.rel target = $region3
  $region8: #{tpu_custom_call.1} parent=0 // loop_exit
    _

</llo_original>
